<compile_context>
chip_gen: v5e
topology: v5e:2x2
jax: 0.10.0
libtpu: 0.0.40
codegen_flags: <defaults>
</compile_context>

<pallas_src>
import functools

import jax
import jax.numpy as jnp
from jax.experimental import pallas as pl
from jax.experimental.pallas import tpu as pltpu


# ---------------------------------------------------------------------------
# Kernel
# ---------------------------------------------------------------------------
def sel_head_kernel(
    x_ref,       # (TB, IN)  bf16  input tile (batch-blocked)
    w0_ref,      # (IN, H)   bf16  backbone stand-in weight (resident)
    b0_ref,      # (1, H)    f32   backbone stand-in bias   (resident)
    wheads_ref,  # (H, 17)   bf16  packed [fc_sel (BN-folded) | pred_head] weight
    bheads_ref,  # (1, 17)   f32   packed [fc_sel (BN-folded) | pred_head] bias
    wsel2_ref,   # (1, 16)   f32   fc_sel_2 weight as a row
    bsel2_ref,   # (1,)      f32   fc_sel_2 bias (SMEM scalar)
    out_ref,     # (TB, 2)   f32   [:, 0:1] = x_pred, [:, 1:2] = x_sel
):
    # --- backbone stand-in: x_feat = relu(x @ W0 + b0)  (bf16 MXU, f32 acc) ---
    x_feat = jnp.dot(x_ref[...], w0_ref[...], preferred_element_type=jnp.float32)
    x_feat = jnp.maximum(x_feat + b0_ref[...], 0.0)

    # --- fused heads: one MXU pass covers fc_sel(+BN folded) and pred_head ---
    h_all = jnp.dot(x_feat.astype(jnp.bfloat16), wheads_ref[...],
                    preferred_element_type=jnp.float32)
    h_all = h_all + bheads_ref[...]

    pred = h_all[:, 16:17]                      # pred_head output (bias included)
    h_sel = jnp.maximum(h_all[:, :16], 0.0)     # fc_sel -> BN(eval) -> ReLU

    # --- fc_sel_2 (16 -> 1): VPU multiply + cross-lane sum instead of a
    #     K=16/N=1 matmul; sigmoid routes exp/recip to the EUP slot.
    s = jnp.sum(h_sel * wsel2_ref[...], axis=-1, keepdims=True) + bsel2_ref[0]
    sel = jax.nn.sigmoid(s)

    out_ref[:, 0:1] = pred
    out_ref[:, 1:2] = sel


# ---------------------------------------------------------------------------
# Host-side (one-time) parameter packing: BN fold, head fusion, bf16 casts
# ---------------------------------------------------------------------------
def pack_params(p):
    wsel_f = p["wsel"] * p["bn_scale"]                       # (H,16) * (1,16)
    bsel_f = p["bsel"] * p["bn_scale"] + p["bn_shift"]       # (1,16)
    wheads = jnp.concatenate([wsel_f, p["wpred"]], axis=1)   # (H, 17)
    bheads = jnp.concatenate([bsel_f, p["bpred"]], axis=1)   # (1, 17)
    return dict(
        w0=p["w0"].astype(jnp.bfloat16),
        b0=p["b0"],
        wheads=wheads.astype(jnp.bfloat16),
        bheads=bheads,
        wsel2_row=p["wsel2"].reshape(1, 16),
        bsel2=p["bsel2"].reshape(1,),
    )


# ---------------------------------------------------------------------------
# Forward wrapper
# ---------------------------------------------------------------------------
@functools.partial(jax.jit, static_argnames=("tb",))
def sel_head_forward(x, packed, tb=512):
    """x: (B, IN) float32. Returns (x_pred (B,1), x_sel (B,1))."""
    B, IN = x.shape
    H = packed["w0"].shape[1]
    NH = packed["wheads"].shape[1]  # 17

    # Batch tile: biggest that fits comfortably in VMEM; second-minor block dim
    # must be a multiple of 8 unless it equals the full batch dimension.
    TB = min(tb, B)
    if TB < B:
        TB = max(8, (TB // 8) * 8)
    nb = pl.cdiv(B, TB)

    x_bf16 = x.astype(jnp.bfloat16)

    const = lambda i: (0, 0)  # resident operands: same block every grid step

    out = pl.pallas_call(
        sel_head_kernel,
        grid=(nb,),
        in_specs=[
            pl.BlockSpec((TB, IN), lambda i: (i, 0)),           # x: batch-tiled
            pl.BlockSpec((IN, H), const),                       # w0 (resident)
            pl.BlockSpec((1, H), const),                        # b0
            pl.BlockSpec((H, NH), const),                       # packed head weight
            pl.BlockSpec((1, NH), const),                       # packed head bias
            pl.BlockSpec((1, 16), const),                       # fc_sel_2 row
            pl.BlockSpec(memory_space=pltpu.MemorySpace.SMEM),  # fc_sel_2 bias
        ],
        out_specs=pl.BlockSpec((TB, 2), lambda i: (i, 0)),
        out_shape=jax.ShapeDtypeStruct((B, 2), jnp.float32),
        compiler_params=pltpu.CompilerParams(
            dimension_semantics=("parallel",),  # shard batch tiles across TCs
        ),
    )(
        x_bf16, packed["w0"], packed["b0"],
        packed["wheads"], packed["bheads"],
        packed["wsel2_row"], packed["bsel2"],
    )

    return out[:, 0:1], out[:, 1:2]


# ---------------------------------------------------------------------------
# Parameter construction (PyTorch-default inits) + references
# ---------------------------------------------------------------------------
def make_params(key, in_dim, hidden_dim):
    ks = jax.random.split(key, 4)

    def lin(k, fan_in, fan_out):
        lim = 1.0 / jnp.sqrt(jnp.float32(fan_in))
        kw, kb = jax.random.split(k)
        w = jax.random.uniform(kw, (fan_in, fan_out), jnp.float32, -lim, lim)
        b = jax.random.uniform(kb, (1, fan_out), jnp.float32, -lim, lim)
        return w, b

    w0, b0 = lin(ks[0], in_dim, hidden_dim)      # backbone stand-in
    wsel, bsel = lin(ks[1], hidden_dim, 16)      # fc_sel
    wsel2, bsel2 = lin(ks[2], 16, 1)             # fc_sel_2
    wpred, bpred = lin(ks[3], hidden_dim, 1)     # pred_head

    # BatchNorm1d(16) eval-mode with default init, as scale/shift.
    eps = 1e-5
    gamma = jnp.ones((1, 16), jnp.float32)
    beta = jnp.zeros((1, 16), jnp.float32)
    running_mean = jnp.zeros((1, 16), jnp.float32)
    running_var = jnp.ones((1, 16), jnp.float32)
    bn_scale = gamma / jnp.sqrt(running_var + eps)
    bn_shift = beta - running_mean * bn_scale

    return dict(w0=w0, b0=b0, wsel=wsel, bsel=bsel,
                bn_scale=bn_scale, bn_shift=bn_shift,
                wsel2=wsel2, bsel2=bsel2, wpred=wpred, bpred=bpred)


def sel_head_reference_f32(x, p):
    """Pure-f32 reference matching the original module's math."""
    x_feat = jnp.maximum(x @ p["w0"] + p["b0"], 0.0)
    h = x_feat @ p["wsel"] + p["bsel"]
    h = jnp.maximum(h * p["bn_scale"] + p["bn_shift"], 0.0)
    x_sel = jax.nn.sigmoid(h @ p["wsel2"] + p["bsel2"])
    x_pred = x_feat @ p["wpred"] + p["bpred"]
    return x_pred, x_sel


def sel_head_reference_bf16(x, packed):
    """Pure-JAX mirror of the kernel math (bf16 MXU inputs, f32 accumulate)."""
    x_feat = jnp.dot(x.astype(jnp.bfloat16), packed["w0"],
                     preferred_element_type=jnp.float32) + packed["b0"]
    x_feat = jnp.maximum(x_feat, 0.0)
    h_all = jnp.dot(x_feat.astype(jnp.bfloat16), packed["wheads"],
                    preferred_element_type=jnp.float32) + packed["bheads"]
    pred = h_all[:, 16:17]
    h_sel = jnp.maximum(h_all[:, :16], 0.0)
    s = jnp.sum(h_sel * packed["wsel2_row"], axis=-1, keepdims=True) + packed["bsel2"]
    return pred, jax.nn.sigmoid(s)


if __name__ == "__main__":
    B, IN_DIM, HIDDEN_DIM = 8, 16, 32
    key = jax.random.PRNGKey(0)
    kx, kp = jax.random.split(key)
    x = jax.random.normal(kx, (B, IN_DIM), jnp.float32)
    params = make_params(kp, IN_DIM, HIDDEN_DIM)
    packed = pack_params(params)

    x_pred, x_sel = sel_head_forward(x, packed)
    jax.block_until_ready((x_pred, x_sel))
    assert x_pred.shape == (B, 1) and x_sel.shape == (B, 1)

    # Tight check against a reference mirroring the kernel's bf16/f32 math.
    rb_pred, rb_sel = sel_head_reference_bf16(x, packed)
    assert jnp.allclose(x_pred, rb_pred, atol=1e-4, rtol=1e-4)
    assert jnp.allclose(x_sel, rb_sel, atol=1e-4, rtol=1e-4)

    # Loose check against the full-f32 original-module semantics
    # (bf16 MXU inputs introduce ~1e-2 relative error at worst).
    rf_pred, rf_sel = sel_head_reference_f32(x, params)
    assert jnp.allclose(x_pred, rf_pred, atol=5e-2, rtol=5e-2)
    assert jnp.allclose(x_sel, rf_sel, atol=5e-2, rtol=5e-2)

    print("KERNEL_OK")
</pallas_src>

<mosaic_0001>
module attributes {stable_mosaic.version = 11 : i64} {
  func.func @sel_head_kernel(%arg0: i32, %arg1: memref<8x16xbf16, #tpu.memory_space<vmem>>, %arg2: memref<16x32xbf16, #tpu.memory_space<vmem>>, %arg3: memref<1x32xf32, #tpu.memory_space<vmem>>, %arg4: memref<32x17xbf16, #tpu.memory_space<vmem>>, %arg5: memref<1x17xf32, #tpu.memory_space<vmem>>, %arg6: memref<1x16xf32, #tpu.memory_space<vmem>>, %arg7: memref<1xf32, #tpu.memory_space<smem>>, %arg8: memref<8x2xf32, #tpu.memory_space<vmem>>) attributes {dimension_semantics = [#tpu.dimension_semantics<parallel>], iteration_bounds = array<i64: 1>, scalar_prefetch = 0 : i64, scratch_operands = 0 : i64, tpu.core_type = #tpu.core_type<tc>, window_params = [{transform_indices = @transform_0, window_bounds = array<i64: 8, 16>}, {pipeline_mode = #tpu.pipeline_mode<synchronous>, transform_indices = @transform_1, window_bounds = array<i64: 16, 32>}, {pipeline_mode = #tpu.pipeline_mode<synchronous>, transform_indices = @transform_2, window_bounds = array<i64: 1, 32>}, {pipeline_mode = #tpu.pipeline_mode<synchronous>, transform_indices = @transform_3, window_bounds = array<i64: 32, 17>}, {pipeline_mode = #tpu.pipeline_mode<synchronous>, transform_indices = @transform_4, window_bounds = array<i64: 1, 17>}, {pipeline_mode = #tpu.pipeline_mode<synchronous>, transform_indices = @transform_5, window_bounds = array<i64: 1, 16>}, {transform_indices = @transform_6, window_bounds = array<i64: 1>}, {transform_indices = @transform_7, window_bounds = array<i64: 8, 2>}]} {
    %c0 = arith.constant 0 : index
    %c0_0 = arith.constant 0 : index
    %0 = vector.load %arg1[%c0, %c0_0] : memref<8x16xbf16, #tpu.memory_space<vmem>>, vector<8x16xbf16>
    %c0_1 = arith.constant 0 : index
    %c0_2 = arith.constant 0 : index
    %1 = vector.load %arg2[%c0_1, %c0_2] : memref<16x32xbf16, #tpu.memory_space<vmem>>, vector<16x32xbf16>
    %cst = arith.constant dense<0.000000e+00> : vector<8x32xf32>
    %2 = tpu.matmul %0, %1, %cst {dimension_numbers = #tpu.dot_dimension_numbers<[1], [0], [0], [1], [0, 0, 1, 1], [], []>} : vector<8x16xbf16>, vector<16x32xbf16>, vector<8x32xf32> -> vector<8x32xf32>
    %c0_3 = arith.constant 0 : index
    %c0_4 = arith.constant 0 : index
    %3 = vector.load %arg3[%c0_3, %c0_4] : memref<1x32xf32, #tpu.memory_space<vmem>>, vector<1x32xf32>
    %4 = vector.broadcast %3 : vector<1x32xf32> to vector<8x32xf32>
    %5 = arith.addf %2, %4 : vector<8x32xf32>
    %cst_5 = arith.constant 0.000000e+00 : f32
    %6 = vector.broadcast %cst_5 : f32 to vector<8x32xf32>
    %7 = arith.maximumf %5, %6 : vector<8x32xf32>
    %8 = arith.truncf %7 : vector<8x32xf32> to vector<8x32xbf16>
    %c0_6 = arith.constant 0 : index
    %c0_7 = arith.constant 0 : index
    %9 = vector.load %arg4[%c0_6, %c0_7] : memref<32x17xbf16, #tpu.memory_space<vmem>>, vector<32x17xbf16>
    %cst_8 = arith.constant dense<0.000000e+00> : vector<8x17xf32>
    %10 = tpu.matmul %8, %9, %cst_8 {dimension_numbers = #tpu.dot_dimension_numbers<[1], [0], [0], [1], [0, 0, 1, 1], [], []>} : vector<8x32xbf16>, vector<32x17xbf16>, vector<8x17xf32> -> vector<8x17xf32>
    %c0_9 = arith.constant 0 : index
    %c0_10 = arith.constant 0 : index
    %11 = vector.load %arg5[%c0_9, %c0_10] : memref<1x17xf32, #tpu.memory_space<vmem>>, vector<1x17xf32>
    %12 = vector.broadcast %11 : vector<1x17xf32> to vector<8x17xf32>
    %13 = arith.addf %10, %12 : vector<8x17xf32>
    %14 = vector.extract_strided_slice %13 {offsets = [0, 16], sizes = [8, 1], strides = [1, 1]} : vector<8x17xf32> to vector<8x1xf32>
    %15 = vector.extract_strided_slice %13 {offsets = [0, 0], sizes = [8, 16], strides = [1, 1]} : vector<8x17xf32> to vector<8x16xf32>
    %cst_11 = arith.constant 0.000000e+00 : f32
    %16 = vector.broadcast %cst_11 : f32 to vector<8x16xf32>
    %17 = arith.maximumf %15, %16 : vector<8x16xf32>
    %c0_12 = arith.constant 0 : index
    %c0_13 = arith.constant 0 : index
    %18 = vector.load %arg6[%c0_12, %c0_13] : memref<1x16xf32, #tpu.memory_space<vmem>>, vector<1x16xf32>
    %19 = vector.broadcast %18 : vector<1x16xf32> to vector<8x16xf32>
    %20 = arith.mulf %17, %19 : vector<8x16xf32>
    %cst_14 = arith.constant dense<0.000000e+00> : vector<8xf32>
    %21 = vector.multi_reduction <add>, %20, %cst_14 [1] : vector<8x16xf32> to vector<8xf32>
    %22 = vector.shape_cast %21 : vector<8xf32> to vector<8x1xf32>
    %c0_15 = arith.constant 0 : index
    %23 = memref.load %arg7[%c0_15] : memref<1xf32, #tpu.memory_space<smem>>
    %24 = vector.broadcast %23 : f32 to vector<8x1xf32>
    %25 = arith.addf %22, %24 : vector<8x1xf32>
    %26 = arith.negf %25 : vector<8x1xf32>
    %27 = math.exp %26 : vector<8x1xf32>
    %cst_16 = arith.constant 1.000000e+00 : f32
    %28 = vector.broadcast %cst_16 : f32 to vector<8x1xf32>
    %29 = arith.addf %28, %27 : vector<8x1xf32>
    %30 = arith.divf %28, %29 : vector<8x1xf32>
    %c0_17 = arith.constant 0 : index
    %c0_18 = arith.constant 0 : index
    %31 = vector.load %arg8[%c0_17, %c0_18] : memref<8x2xf32, #tpu.memory_space<vmem>>, vector<8x1xf32>
    tpu.vector_store %arg8[%c0_17, %c0_18], %14 {strides = array<i32>} : memref<8x2xf32, #tpu.memory_space<vmem>>, vector<8x1xf32>,
    %c0_19 = arith.constant 0 : index
    %c1 = arith.constant 1 : index
    %32 = vector.load %arg8[%c0_19, %c1] : memref<8x2xf32, #tpu.memory_space<vmem>>, vector<8x1xf32>
    tpu.vector_store %arg8[%c0_19, %c1], %30 {strides = array<i32>} : memref<8x2xf32, #tpu.memory_space<vmem>>, vector<8x1xf32>,
    return
  }
  func.func @transform_0(%arg0: i32) -> (i32, i32) {
    %c0_i32 = arith.constant 0 : i32
    %c0_i32_0 = arith.constant 0 : i32
    return %arg0, %c0_i32 : i32, i32
  }
  func.func @transform_1(%arg0: i32) -> (i32, i32) {
    %c0_i32 = arith.constant 0 : i32
    %c0_i32_0 = arith.constant 0 : i32
    %c0_i32_1 = arith.constant 0 : i32
    return %c0_i32, %c0_i32_0 : i32, i32
  }
  func.func @transform_2(%arg0: i32) -> (i32, i32) {
    %c0_i32 = arith.constant 0 : i32
    %c0_i32_0 = arith.constant 0 : i32
    %c0_i32_1 = arith.constant 0 : i32
    return %c0_i32, %c0_i32_0 : i32, i32
  }
  func.func @transform_3(%arg0: i32) -> (i32, i32) {
    %c0_i32 = arith.constant 0 : i32
    %c0_i32_0 = arith.constant 0 : i32
    %c0_i32_1 = arith.constant 0 : i32
    return %c0_i32, %c0_i32_0 : i32, i32
  }
  func.func @transform_4(%arg0: i32) -> (i32, i32) {
    %c0_i32 = arith.constant 0 : i32
    %c0_i32_0 = arith.constant 0 : i32
    %c0_i32_1 = arith.constant 0 : i32
    return %c0_i32, %c0_i32_0 : i32, i32
  }
  func.func @transform_5(%arg0: i32) -> (i32, i32) {
    %c0_i32 = arith.constant 0 : i32
    %c0_i32_0 = arith.constant 0 : i32
    %c0_i32_1 = arith.constant 0 : i32
    return %c0_i32, %c0_i32_0 : i32, i32
  }
  func.func @transform_6(%arg0: i32) -> i32 {
    %c0_i32 = arith.constant 0 : i32
    %c0_i32_0 = arith.constant 0 : i32
    return %c0_i32 : i32
  }
  func.func @transform_7(%arg0: i32) -> (i32, i32) {
    %c0_i32 = arith.constant 0 : i32
    %c0_i32_0 = arith.constant 0 : i32
    return %arg0, %c0_i32 : i32, i32
  }
}

</mosaic_0001>

<llo_original>
// kernel: sel_head_forward.1
$region0: #{sel_head_forward.1}
  #allocation0 [shape = 'u32[]', space=smem, size = 0x4, offset = 0x4, fixed_abs, tag = 'smem constant byte address 0x4 - core index']
  #allocation1 [shape = 'u32[72,128]{1,0:T(1,128)}', space=vmem, size = 0x9000, scoped, tag = 'internal scratch']
  #allocation2 [shape = 'f32[1]{0:T(128)S(6)}', space=smem, size = 0x200, scoped, tag = 'scoped memory for sel_head_forward.1']
  %s0 = inlined_call_operand.vmem [shape: bf16[8,16], index: 0, kind: input, shape index: {}]
  %s1 = inlined_call_operand.vmem [shape: bf16[16,32], index: 1, kind: input, shape index: {}]
  %s2 = inlined_call_operand.vmem [shape: f32[1,32], index: 2, kind: input, shape index: {}]
  %s3 = inlined_call_operand.vmem [shape: bf16[32,17], index: 3, kind: input, shape index: {}]
  %s4 = inlined_call_operand.vmem [shape: f32[1,17], index: 4, kind: input, shape index: {}]
  %s5 = inlined_call_operand.vmem [shape: f32[1,16], index: 5, kind: input, shape index: {}]
  %s6 = inlined_call_operand.<no memory space> [shape: f32[1], index: 6, kind: input, shape index: {}]
  %s7 = inlined_call_operand.vmem [shape: f32[8,2], index: 7, kind: output, shape index: {}]
  %s8 = sld [smem:[#allocation0]]
  $region38: #{sel_head_forward.1} parent=0
    _
  %s10 = ssub.s32 1, %s8
  %s11 = scalar_select 0, %s10, %s8
  %12 = sst [smem:[#allocation2]] %s6
  // Predicated region
  $region2: #{sel_head_forward.1} parent=0 // pred_check
    _
  $region3: #{sel_head_forward.1} parent=0 // pred_check_branch
    %14 = sbr.rel (0) target = $region5
  $region4: #{sel_head_forward.1} parent=0 // pred_region
    _
  $region5: #{sel_head_forward.1} parent=0 // pred_fallthru
    _
  // Predicated region
  $region6: #{sel_head_forward.1} parent=0 // pred_check
    _
  $region7: #{sel_head_forward.1} parent=0 // pred_check_branch
    %16 = sbr.rel (0) target = $region9
  $region8: #{sel_head_forward.1} parent=0 // pred_region
    _
  $region9: #{sel_head_forward.1} parent=0 // pred_fallthru
    _
  // Predicated region
  $region10: #{sel_head_forward.1} parent=0 // pred_check
    _
  $region11: #{sel_head_forward.1} parent=0 // pred_check_branch
    %18 = sbr.rel (0) target = $region13
  $region12: #{sel_head_forward.1} parent=0 // pred_region
    _
  $region13: #{sel_head_forward.1} parent=0 // pred_fallthru
    _
  // Predicated region
  $region14: #{sel_head_forward.1} parent=0 // pred_check
    _
  $region15: #{sel_head_forward.1} parent=0 // pred_check_branch
    %20 = sbr.rel (0) target = $region17
  $region16: #{sel_head_forward.1} parent=0 // pred_region
    _
  $region17: #{sel_head_forward.1} parent=0 // pred_fallthru
    _
  // Predicated region
  $region18: #{sel_head_forward.1} parent=0 // pred_check
    _
  $region19: #{sel_head_forward.1} parent=0 // pred_check_branch
    %22 = sbr.rel (0) target = $region21
  $region20: #{sel_head_forward.1} parent=0 // pred_region
    _
  $region21: #{sel_head_forward.1} parent=0 // pred_fallthru
    _
  // Predicated region
  $region22: #{sel_head_forward.1} parent=0 // pred_check
    _
  $region23: #{sel_head_forward.1} parent=0 // pred_check_branch
    %24 = sbr.rel (0) target = $region25
  $region24: #{sel_head_forward.1} parent=0 // pred_region
    _
  $region25: #{sel_head_forward.1} parent=0 // pred_fallthru
    _
  // Predicated region
  $region26: #{sel_head_forward.1} parent=0 // pred_check
    _
  $region27: #{sel_head_forward.1} parent=0 // pred_check_branch
    %26 = sbr.rel (0) target = $region29
  $region28: #{sel_head_forward.1} parent=0 // pred_region
    _
  $region29: #{sel_head_forward.1} parent=0 // pred_fallthru
    _
  %v28 = vld [vmem:[%s0] sm:$0xf]
  %v29 = vld [vmem:[%s1] sm:$0xf]
  %v30 = vld [vmem:[%s1 + $0x4] sm:$0xf]
  %v31 = vld [vmem:[%s2] sm:$0x1]
  %v33 = vperm.slane %v31, 0
  %v37 = vunpack.c.l.b16 %v29
  %v38 = vunpack.c.l.b16 %v30
  %v39 = vpack.c.b16 %v38, %v37
  %vm41 = vcmask 130048
  %v43 = vsel %vm41, %v28, 0
  %45 = vmatpush.bf16.msra.mxu0 0
  %46 = vmatpush.bf16.msra.mxu0 0
  %47 = vmatpush.bf16.msra.mxu0 0
  %48 = vmatpush.bf16.msra.mxu0 0
  %49 = vmatpush.bf16.msra.mxu0 0
  %50 = vmatpush.bf16.msra.mxu0 0
  %51 = vmatpush.bf16.msra.mxu0 0
  %52 = vmatpush.bf16.msra.mxu0 %v39
  %53 = vmatmul.bf16.gmra.mxu0 %v43
  %v54 = vpop.f32.mrf.mxu0
  %v55 = vadd.f32 %v33, %v54
  %v56 = vpop.f32.mrf.mxu0
  %57 = vdwg.mxu0
  %v58 = vmax.f32 %v55, 0.0
  %v59 = vpack.c.bf16 %v58, %v58
  %v60 = vld [vmem:[%s3] sm:$0xf]
  %v61 = vld [vmem:[%s3 + $0x4] sm:$0xf]
  %v62 = vld [vmem:[%s3 + $0x8] sm:$0xf]
  %v63 = vld [vmem:[%s3 + $0xc] sm:$0xf]
  %v64 = vld [vmem:[%s4] sm:$0x1]
  %v66 = vperm.slane %v64, 0
  %v72 = vunpack.c.l.b16 %v60
  %v73 = vunpack.c.l.b16 %v61
  %v74 = vunpack.c.l.b16 %v62
  %v75 = vunpack.c.l.b16 %v63
  %v76 = vpack.c.b16 %v73, %v72
  %v77 = vpack.c.b16 %v75, %v74
  %vm80 = vcmask 261120
  %v82 = vsel %vm80, %v59, 0
  %84 = vmatpush.bf16.msra.mxu0 0
  %85 = vmatpush.bf16.msra.mxu0 0
  %86 = vmatpush.bf16.msra.mxu0 0
  %87 = vmatpush.bf16.msra.mxu0 0
  %88 = vmatpush.bf16.msra.mxu0 0
  %89 = vmatpush.bf16.msra.mxu0 0
  %90 = vmatpush.bf16.msra.mxu0 %v77
  %91 = vmatpush.bf16.msra.mxu0 %v76
  %92 = vmatmul.bf16.gmra.mxu0 %v82
  %v93 = vpop.f32.mrf.mxu0
  %v94 = vadd.f32 %v66, %v93
  %v95 = vpop.f32.mrf.mxu0
  %96 = vdwg.mxu0
  %v97 = vmax.f32 %v94, 0.0
  %v98 = vld [vmem:[%s5] sm:$0x1]
  %v100 = vperm.slane %v98, 0
  %v102 = vmul.f32 %v97, %v100
  %v103 = vsel %vm41, %v102, 0.0
  %104 = vadd.xlane.f32.xlu0 %v103
  %v105 = vpop.xlane.xlu0 %104
  %s106 = sld [smem:[#allocation2]]
  %v107 = vstv %s106
  %v108 = vadd.f32 %v105, %v107
  %v109 = vxor.u32 %v108, 2147483648
  %v110 = vmul.f32 %v109, 1.442695
  %v111 = vpow.pop %v110
  %v112 = vadd.f32 %v111, 1.0
  %v113 = vrcp.pop %v112
  %v114 = vmul.f32 %v112, %v113
  %v115 = vsub.f32 1.0, %v114
  %v116 = vmul.f32 %v113, %v115
  %v117 = vadd.f32 %v113, %v116
  %vm118 = vweird.f32 %v112
  %vm119 = vweird.f32 %v113
  %vm120 = vmor %vm118, %vm119
  %v121 = vsel %vm120, %v113, %v117
  %v122 = vand.u32 2147483647, %v112
  %vm123 = vcmp.eq.f32.partialorder %v122, 8.507059e+37
  %v124 = vand.u32 %v112, 2147483648
  %v125 = vor.u32 1.1754944e-38, %v124
  %v126 = vsel %vm123, %v125, %v121
  %v127 = vmul.f32 1.0, %v126
  %129 = vrot.lane.b32.xlu0 %v94, 112
  %v130 = vpop.permute.xlu0 %129
  %vm132 = vcmask 7168
  %133 = vst.msk [vmem:[%s7] sm:$0xff] %vm132, %v130
  %vm134 = vcmask 15368
  %135 = vst.msk [vmem:[%s7] sm:$0xff] %vm134, %v127
  // Predicated region
  $region30: #{sel_head_forward.1} parent=0 // pred_check
    _
  $region31: #{sel_head_forward.1} parent=0 // pred_check_branch
    %137 = sbr.rel (0) target = $region33
  $region32: #{sel_head_forward.1} parent=0 // pred_region
    _
  $region33: #{sel_head_forward.1} parent=0 // pred_fallthru
    _
  // Predicated region
  $region34: #{sel_head_forward.1} parent=0 // pred_check
    _
  $region35: #{sel_head_forward.1} parent=0 // pred_check_branch
    %139 = sbr.rel (0) target = $region37
  $region36: #{sel_head_forward.1} parent=0 // pred_region
    _
  $region37: #{sel_head_forward.1} parent=0 // pred_fallthru
    _

</llo_original>
